<compile_context>
chip_gen: v5e
topology: v5e:2x2
jax: 0.10.0
libtpu: 0.0.40
codegen_flags: <defaults>
</compile_context>

<pallas_src>
import functools
import math

import jax
import jax.numpy as jnp
from jax.experimental import pallas as pl
from jax.experimental.pallas import tpu as pltpu

_LANE = 128
_SUBLANE = 8


def _round_up(n, m):
    return ((n + m - 1) // m) * m


# ----------------------------- Pallas kernel ------------------------------- #
def _actor_mlp_kernel(x_ref, g_ref, w1_ref, b1_ref, w2_ref, b2_ref,
                      w3_ref, b3_ref, logits_ref, policy_ref, *, action_size):
    """Fused ActorMLP forward on one batch tile.

    x_ref  : [TB, D_pad]   g_ref : [TB, A_pad]   (Gumbel noise -log(-log u))
    w1_ref : [D_pad, H_pad]  b1_ref : [1, H_pad]
    w2_ref : [H_pad, H_pad]  b2_ref : [1, H_pad]
    w3_ref : [H_pad, A_pad]  b3_ref : [1, A_pad]
    logits_ref / policy_ref : [TB, A_pad]
    """
    slope = jnp.float32(0.01)
    neg_big = jnp.float32(-1e30)

    x = x_ref[...]

    # layer 1 + LeakyReLU
    h1 = jnp.dot(x, w1_ref[...], preferred_element_type=jnp.float32) + b1_ref[...]
    h1 = jnp.where(h1 > 0, h1, slope * h1)

    # layer 2 + LeakyReLU
    h2 = jnp.dot(h1, w2_ref[...], preferred_element_type=jnp.float32) + b2_ref[...]
    h2 = jnp.where(h2 > 0, h2, slope * h2)

    # output head (no activation)
    logits = jnp.dot(h2, w3_ref[...], preferred_element_type=jnp.float32) + b3_ref[...]
    logits_ref[...] = logits.astype(logits_ref.dtype)

    # Gumbel-softmax over the real action columns only (padded cols masked).
    col = jax.lax.broadcasted_iota(jnp.int32, logits.shape, 1)
    valid = col < action_size
    z = jnp.where(valid, logits + g_ref[...], neg_big)
    z_max = jnp.max(z, axis=-1, keepdims=True)
    e = jnp.where(valid, jnp.exp(z - z_max), jnp.float32(0.0))
    denom = jnp.sum(e, axis=-1, keepdims=True)
    policy_ref[...] = (e / denom).astype(policy_ref.dtype)


# ------------------------------ JAX wrapper -------------------------------- #
def actor_mlp_forward(inp, gumbel, params, *, num_inputs, hidden_size,
                      action_size, block_batch=256, model_original_out=False):
    """Pads input/noise to the tiled/padded shapes and calls the fused kernel."""
    w1, b1, w2, b2, w3, b3 = params          # already lane-padded, [in, out]
    B = inp.shape[0]
    D_pad, H_pad = w1.shape
    A_pad = w3.shape[1]

    TB = min(block_batch, _round_up(B, _SUBLANE))
    B_pad = _round_up(B, TB)

    x = jnp.zeros((B_pad, D_pad), jnp.float32)
    x = x.at[:B, :num_inputs].set(inp.astype(jnp.float32))
    g = jnp.zeros((B_pad, A_pad), jnp.float32)
    g = g.at[:B, :action_size].set(gumbel.astype(jnp.float32))

    row = lambda i: (i, 0)      # batch-tiled inputs/outputs
    const = lambda i: (0, 0)    # weights/biases stay VMEM-resident

    kernel = functools.partial(_actor_mlp_kernel, action_size=action_size)

    logits_p, policy_p = pl.pallas_call(
        kernel,
        out_shape=(jax.ShapeDtypeStruct((B_pad, A_pad), jnp.float32),
                   jax.ShapeDtypeStruct((B_pad, A_pad), jnp.float32)),
        grid=(B_pad // TB,),
        in_specs=[
            pl.BlockSpec((TB, D_pad), row),        # x tile
            pl.BlockSpec((TB, A_pad), row),        # gumbel tile
            pl.BlockSpec((D_pad, H_pad), const),   # W1
            pl.BlockSpec((1, H_pad), const),       # b1
            pl.BlockSpec((H_pad, H_pad), const),   # W2
            pl.BlockSpec((1, H_pad), const),       # b2
            pl.BlockSpec((H_pad, A_pad), const),   # W3
            pl.BlockSpec((1, A_pad), const),       # b3
        ],
        out_specs=(pl.BlockSpec((TB, A_pad), row),
                   pl.BlockSpec((TB, A_pad), row)),
        compiler_params=pltpu.CompilerParams(
            dimension_semantics=("parallel",)),    # megacore-shardable on v7x
    )(x, g, w1, b1, w2, b2, w3, b3)

    model_out = logits_p[:B, :action_size]
    policy = policy_p[:B, :action_size]
    if model_original_out:
        return model_out, policy
    return policy


# --------------------------- parameter creation ----------------------------- #
def init_actor_params(key, num_inputs, action_size, hidden_size):
    """Mirrors the torch init (xavier_uniform with leaky_relu gain on weights,
    default nn.Linear bias init), stored transposed ([in, out]) and zero-padded
    to 128-lane widths so the kernel runs full-width."""
    gain = math.sqrt(2.0 / (1.0 + 0.01 ** 2))   # calculate_gain('leaky_relu')
    D_pad = _round_up(num_inputs, _LANE)
    H_pad = _round_up(hidden_size, _LANE)
    A_pad = _round_up(action_size, _LANE)

    def xavier(k, fan_in, fan_out, rows_pad, cols_pad):
        bound = gain * math.sqrt(6.0 / (fan_in + fan_out))
        w = jax.random.uniform(k, (fan_in, fan_out), jnp.float32,
                               minval=-bound, maxval=bound)
        return jnp.zeros((rows_pad, cols_pad), jnp.float32).at[:fan_in, :fan_out].set(w)

    def bias(k, fan_in, fan_out, cols_pad):
        bound = 1.0 / math.sqrt(fan_in)
        b = jax.random.uniform(k, (1, fan_out), jnp.float32,
                               minval=-bound, maxval=bound)
        return jnp.zeros((1, cols_pad), jnp.float32).at[:, :fan_out].set(b)

    ks = jax.random.split(key, 6)
    w1 = xavier(ks[0], num_inputs, hidden_size, D_pad, H_pad)
    b1 = bias(ks[1], num_inputs, hidden_size, H_pad)
    w2 = xavier(ks[2], hidden_size, hidden_size, H_pad, H_pad)
    b2 = bias(ks[3], hidden_size, hidden_size, H_pad)
    w3 = xavier(ks[4], hidden_size, action_size, H_pad, A_pad)
    b3 = bias(ks[5], hidden_size, action_size, A_pad)
    return (w1, b1, w2, b2, w3, b3)


# ---------------------------------- main ------------------------------------ #
if __name__ == "__main__":
    num_inputs = 16
    action_size = 8
    hidden_size = 32
    batch = 8

    key = jax.random.PRNGKey(0)
    k_x, k_u, k_p = jax.random.split(key, 3)

    inp = jax.random.normal(k_x, (batch, num_inputs), jnp.float32)
    # torch.rand_like's RNG replaced by explicit JAX-generated Gumbel noise.
    u = jax.random.uniform(k_u, (batch, action_size), jnp.float32,
                           minval=1e-6, maxval=1.0 - 1e-6)
    gumbel = -jnp.log(-jnp.log(u))
    params = init_actor_params(k_p, num_inputs, action_size, hidden_size)

    model_out, policy = actor_mlp_forward(
        inp, gumbel, params, num_inputs=num_inputs, hidden_size=hidden_size,
        action_size=action_size, model_original_out=True)
    policy = jax.block_until_ready(policy)

    # Pure-JAX reference (same math, outside Pallas) on the unpadded sub-blocks.
    w1, b1, w2, b2, w3, b3 = params
    w1r, b1r = w1[:num_inputs, :hidden_size], b1[:, :hidden_size]
    w2r, b2r = w2[:hidden_size, :hidden_size], b2[:, :hidden_size]
    w3r, b3r = w3[:hidden_size, :action_size], b3[:, :action_size]
    lrelu = lambda t: jnp.where(t > 0, t, 0.01 * t)
    h1 = lrelu(inp @ w1r + b1r)
    h2 = lrelu(h1 @ w2r + b2r)
    logits_ref = h2 @ w3r + b3r
    policy_ref = jax.nn.softmax(logits_ref + gumbel, axis=-1)

    assert model_out.shape == (batch, action_size)
    assert policy.shape == (batch, action_size)
    assert jnp.allclose(model_out, logits_ref, atol=1e-5, rtol=1e-5)
    assert jnp.allclose(policy, policy_ref, atol=1e-5, rtol=1e-5)
    assert jnp.allclose(jnp.sum(policy, axis=-1), 1.0, atol=1e-5)

    print("KERNEL_OK")
</pallas_src>

<mosaic_0001>
module attributes {stable_mosaic.version = 11 : i64} {
  func.func @_actor_mlp_kernel(%arg0: i32, %arg1: memref<8x128xf32, #tpu.memory_space<vmem>>, %arg2: memref<8x128xf32, #tpu.memory_space<vmem>>, %arg3: memref<128x128xf32, #tpu.memory_space<vmem>>, %arg4: memref<1x128xf32, #tpu.memory_space<vmem>>, %arg5: memref<128x128xf32, #tpu.memory_space<vmem>>, %arg6: memref<1x128xf32, #tpu.memory_space<vmem>>, %arg7: memref<128x128xf32, #tpu.memory_space<vmem>>, %arg8: memref<1x128xf32, #tpu.memory_space<vmem>>, %arg9: memref<8x128xf32, #tpu.memory_space<vmem>>, %arg10: memref<8x128xf32, #tpu.memory_space<vmem>>) attributes {dimension_semantics = [#tpu.dimension_semantics<parallel>], iteration_bounds = array<i64: 1>, scalar_prefetch = 0 : i64, scratch_operands = 0 : i64, tpu.core_type = #tpu.core_type<tc>, window_params = [{transform_indices = @transform_0, window_bounds = array<i64: 8, 128>}, {transform_indices = @transform_1, window_bounds = array<i64: 8, 128>}, {pipeline_mode = #tpu.pipeline_mode<synchronous>, transform_indices = @transform_2, window_bounds = array<i64: 128, 128>}, {pipeline_mode = #tpu.pipeline_mode<synchronous>, transform_indices = @transform_3, window_bounds = array<i64: 1, 128>}, {pipeline_mode = #tpu.pipeline_mode<synchronous>, transform_indices = @transform_4, window_bounds = array<i64: 128, 128>}, {pipeline_mode = #tpu.pipeline_mode<synchronous>, transform_indices = @transform_5, window_bounds = array<i64: 1, 128>}, {pipeline_mode = #tpu.pipeline_mode<synchronous>, transform_indices = @transform_6, window_bounds = array<i64: 128, 128>}, {pipeline_mode = #tpu.pipeline_mode<synchronous>, transform_indices = @transform_7, window_bounds = array<i64: 1, 128>}, {transform_indices = @transform_8, window_bounds = array<i64: 8, 128>}, {transform_indices = @transform_9, window_bounds = array<i64: 8, 128>}]} {
    %c0 = arith.constant 0 : index
    %c0_0 = arith.constant 0 : index
    %0 = vector.load %arg1[%c0, %c0_0] : memref<8x128xf32, #tpu.memory_space<vmem>>, vector<8x128xf32>
    %c0_1 = arith.constant 0 : index
    %c0_2 = arith.constant 0 : index
    %1 = vector.load %arg3[%c0_1, %c0_2] : memref<128x128xf32, #tpu.memory_space<vmem>>, vector<128x128xf32>
    %cst = arith.constant dense<0.000000e+00> : vector<8x128xf32>
    %2 = tpu.matmul %0, %1, %cst {dimension_numbers = #tpu.dot_dimension_numbers<[1], [0], [0], [1], [0, 0, 1, 1], [], []>} : vector<8x128xf32>, vector<128x128xf32>, vector<8x128xf32> -> vector<8x128xf32>
    %c0_3 = arith.constant 0 : index
    %c0_4 = arith.constant 0 : index
    %3 = vector.load %arg4[%c0_3, %c0_4] : memref<1x128xf32, #tpu.memory_space<vmem>>, vector<1x128xf32>
    %4 = vector.broadcast %3 : vector<1x128xf32> to vector<8x128xf32>
    %5 = arith.addf %2, %4 : vector<8x128xf32>
    %cst_5 = arith.constant 0.000000e+00 : f32
    %6 = vector.broadcast %cst_5 : f32 to vector<8x128xf32>
    %7 = arith.cmpf ogt, %5, %6 : vector<8x128xf32>
    %cst_6 = arith.constant 0.00999999977 : f32
    %8 = vector.broadcast %cst_6 : f32 to vector<8x128xf32>
    %9 = arith.mulf %8, %5 : vector<8x128xf32>
    %10 = arith.select %7, %5, %9 : vector<8x128xi1>, vector<8x128xf32>
    %c0_7 = arith.constant 0 : index
    %c0_8 = arith.constant 0 : index
    %11 = vector.load %arg5[%c0_7, %c0_8] : memref<128x128xf32, #tpu.memory_space<vmem>>, vector<128x128xf32>
    %cst_9 = arith.constant dense<0.000000e+00> : vector<8x128xf32>
    %12 = tpu.matmul %10, %11, %cst_9 {dimension_numbers = #tpu.dot_dimension_numbers<[1], [0], [0], [1], [0, 0, 1, 1], [], []>} : vector<8x128xf32>, vector<128x128xf32>, vector<8x128xf32> -> vector<8x128xf32>
    %c0_10 = arith.constant 0 : index
    %c0_11 = arith.constant 0 : index
    %13 = vector.load %arg6[%c0_10, %c0_11] : memref<1x128xf32, #tpu.memory_space<vmem>>, vector<1x128xf32>
    %14 = vector.broadcast %13 : vector<1x128xf32> to vector<8x128xf32>
    %15 = arith.addf %12, %14 : vector<8x128xf32>
    %cst_12 = arith.constant 0.000000e+00 : f32
    %16 = vector.broadcast %cst_12 : f32 to vector<8x128xf32>
    %17 = arith.cmpf ogt, %15, %16 : vector<8x128xf32>
    %cst_13 = arith.constant 0.00999999977 : f32
    %18 = vector.broadcast %cst_13 : f32 to vector<8x128xf32>
    %19 = arith.mulf %18, %15 : vector<8x128xf32>
    %20 = arith.select %17, %15, %19 : vector<8x128xi1>, vector<8x128xf32>
    %c0_14 = arith.constant 0 : index
    %c0_15 = arith.constant 0 : index
    %21 = vector.load %arg7[%c0_14, %c0_15] : memref<128x128xf32, #tpu.memory_space<vmem>>, vector<128x128xf32>
    %cst_16 = arith.constant dense<0.000000e+00> : vector<8x128xf32>
    %22 = tpu.matmul %20, %21, %cst_16 {dimension_numbers = #tpu.dot_dimension_numbers<[1], [0], [0], [1], [0, 0, 1, 1], [], []>} : vector<8x128xf32>, vector<128x128xf32>, vector<8x128xf32> -> vector<8x128xf32>
    %c0_17 = arith.constant 0 : index
    %c0_18 = arith.constant 0 : index
    %23 = vector.load %arg8[%c0_17, %c0_18] : memref<1x128xf32, #tpu.memory_space<vmem>>, vector<1x128xf32>
    %24 = vector.broadcast %23 : vector<1x128xf32> to vector<8x128xf32>
    %25 = arith.addf %22, %24 : vector<8x128xf32>
    %c0_19 = arith.constant 0 : index
    %c0_20 = arith.constant 0 : index
    %26 = vector.load %arg9[%c0_19, %c0_20] : memref<8x128xf32, #tpu.memory_space<vmem>>, vector<8x128xf32>
    tpu.vector_store %arg9[%c0_19, %c0_20], %25 {strides = array<i32>} : memref<8x128xf32, #tpu.memory_space<vmem>>, vector<8x128xf32>,
    %27 = tpu.iota {dimensions = array<i32: 1>} : vector<8x128xi32>
    %c8_i32 = arith.constant 8 : i32
    %28 = vector.broadcast %c8_i32 : i32 to vector<8x128xi32>
    %29 = arith.cmpi slt, %27, %28 : vector<8x128xi32>
    %c0_21 = arith.constant 0 : index
    %c0_22 = arith.constant 0 : index
    %30 = vector.load %arg2[%c0_21, %c0_22] : memref<8x128xf32, #tpu.memory_space<vmem>>, vector<8x128xf32>
    %31 = arith.addf %25, %30 : vector<8x128xf32>
    %cst_23 = arith.constant -1.000000e+30 : f32
    %32 = vector.broadcast %cst_23 : f32 to vector<8x128xf32>
    %33 = arith.select %29, %31, %32 : vector<8x128xi1>, vector<8x128xf32>
    %cst_24 = arith.constant dense<0xFF800000> : vector<8xf32>
    %34 = vector.multi_reduction <maximumf>, %33, %cst_24 [1] : vector<8x128xf32> to vector<8xf32>
    %35 = vector.shape_cast %34 : vector<8xf32> to vector<8x1xf32>
    %36 = vector.broadcast %35 : vector<8x1xf32> to vector<8x128xf32>
    %37 = arith.subf %33, %36 : vector<8x128xf32>
    %38 = math.exp %37 : vector<8x128xf32>
    %cst_25 = arith.constant 0.000000e+00 : f32
    %39 = vector.broadcast %cst_25 : f32 to vector<8x128xf32>
    %40 = arith.select %29, %38, %39 : vector<8x128xi1>, vector<8x128xf32>
    %cst_26 = arith.constant dense<0.000000e+00> : vector<8xf32>
    %41 = vector.multi_reduction <add>, %40, %cst_26 [1] : vector<8x128xf32> to vector<8xf32>
    %42 = vector.shape_cast %41 : vector<8xf32> to vector<8x1xf32>
    %43 = vector.broadcast %42 : vector<8x1xf32> to vector<8x128xf32>
    %44 = arith.divf %40, %43 : vector<8x128xf32>
    %c0_27 = arith.constant 0 : index
    %c0_28 = arith.constant 0 : index
    %45 = vector.load %arg10[%c0_27, %c0_28] : memref<8x128xf32, #tpu.memory_space<vmem>>, vector<8x128xf32>
    tpu.vector_store %arg10[%c0_27, %c0_28], %44 {strides = array<i32>} : memref<8x128xf32, #tpu.memory_space<vmem>>, vector<8x128xf32>,
    return
  }
  func.func @transform_0(%arg0: i32) -> (i32, i32) {
    %c0_i32 = arith.constant 0 : i32
    %c0_i32_0 = arith.constant 0 : i32
    return %arg0, %c0_i32 : i32, i32
  }
  func.func @transform_1(%arg0: i32) -> (i32, i32) {
    %c0_i32 = arith.constant 0 : i32
    %c0_i32_0 = arith.constant 0 : i32
    return %arg0, %c0_i32 : i32, i32
  }
  func.func @transform_2(%arg0: i32) -> (i32, i32) {
    %c0_i32 = arith.constant 0 : i32
    %c0_i32_0 = arith.constant 0 : i32
    %c0_i32_1 = arith.constant 0 : i32
    return %c0_i32, %c0_i32_0 : i32, i32
  }
  func.func @transform_3(%arg0: i32) -> (i32, i32) {
    %c0_i32 = arith.constant 0 : i32
    %c0_i32_0 = arith.constant 0 : i32
    %c0_i32_1 = arith.constant 0 : i32
    return %c0_i32, %c0_i32_0 : i32, i32
  }
  func.func @transform_4(%arg0: i32) -> (i32, i32) {
    %c0_i32 = arith.constant 0 : i32
    %c0_i32_0 = arith.constant 0 : i32
    %c0_i32_1 = arith.constant 0 : i32
    return %c0_i32, %c0_i32_0 : i32, i32
  }
  func.func @transform_5(%arg0: i32) -> (i32, i32) {
    %c0_i32 = arith.constant 0 : i32
    %c0_i32_0 = arith.constant 0 : i32
    %c0_i32_1 = arith.constant 0 : i32
    return %c0_i32, %c0_i32_0 : i32, i32
  }
  func.func @transform_6(%arg0: i32) -> (i32, i32) {
    %c0_i32 = arith.constant 0 : i32
    %c0_i32_0 = arith.constant 0 : i32
    %c0_i32_1 = arith.constant 0 : i32
    return %c0_i32, %c0_i32_0 : i32, i32
  }
  func.func @transform_7(%arg0: i32) -> (i32, i32) {
    %c0_i32 = arith.constant 0 : i32
    %c0_i32_0 = arith.constant 0 : i32
    %c0_i32_1 = arith.constant 0 : i32
    return %c0_i32, %c0_i32_0 : i32, i32
  }
  func.func @transform_8(%arg0: i32) -> (i32, i32) {
    %c0_i32 = arith.constant 0 : i32
    %c0_i32_0 = arith.constant 0 : i32
    return %arg0, %c0_i32 : i32, i32
  }
  func.func @transform_9(%arg0: i32) -> (i32, i32) {
    %c0_i32 = arith.constant 0 : i32
    %c0_i32_0 = arith.constant 0 : i32
    return %arg0, %c0_i32 : i32, i32
  }
}

</mosaic_0001>

<llo_original>
// kernel: tpu_custom_call.1
$region0: #{tpu_custom_call.1}
  #allocation0 [shape = 'u32[]', space=smem, size = 0x4, offset = 0x4, fixed_abs, tag = 'smem constant byte address 0x4 - core index']
  #allocation1 [shape = 'u32[72,128]{1,0:T(1,128)}', space=vmem, size = 0x9000, scoped, tag = 'internal scratch']
  %s0 = inlined_call_operand.hbm [shape: f32[8,128], index: 0, kind: input, shape index: {}]
  %s1 = inlined_call_operand.hbm [shape: f32[8,128], index: 1, kind: input, shape index: {}]
  %s2 = inlined_call_operand.hbm [shape: f32[128,128], index: 2, kind: input, shape index: {}]
  %s3 = inlined_call_operand.vmem [shape: f32[1,128], index: 3, kind: input, shape index: {}]
  %s4 = inlined_call_operand.hbm [shape: f32[128,128], index: 4, kind: input, shape index: {}]
  %s5 = inlined_call_operand.vmem [shape: f32[1,128], index: 5, kind: input, shape index: {}]
  %s6 = inlined_call_operand.hbm [shape: f32[128,128], index: 6, kind: input, shape index: {}]
  %s7 = inlined_call_operand.vmem [shape: f32[1,128], index: 7, kind: input, shape index: {}]
  %s8 = inlined_call_operand.hbm [shape: f32[8,128], index: 8, kind: output, shape index: {0}]
  %s9 = inlined_call_operand.hbm [shape: f32[8,128], index: 9, kind: output, shape index: {1}]
  %10 = xla_tuple %s8, %s9
  %s11 = sld [smem:[#allocation0]]
  $region70: #{tpu_custom_call.1} parent=0
    _
  %s13 = ssub.s32 1, %s11
  %s14 = scalar_select 0, %s13, %s11
  $region1: #{tpu_custom_call.1} parent=0
    #allocation2 [shape = 'u8[4096]{0}', space=vmem, size = 0x1000, scoped, tag = 'input window, operand 0, single buffered']
    #allocation3 [shape = 's32[1]{0}', space=sflag, size = 0x4, scoped, tag = 'scoped memory for tpu_custom_call.1']
    #allocation4 [shape = 's32[1]{0}', space=sflag, size = 0x4, scoped, tag = 'scoped memory for tpu_custom_call.1']
    #allocation5 [shape = 'u8[4096]{0}', space=vmem, size = 0x1000, scoped, tag = 'input window, operand 1, single buffered']
    #allocation6 [shape = 's32[1]{0}', space=sflag, size = 0x4, scoped, tag = 'scoped memory for tpu_custom_call.1']
    #allocation7 [shape = 'u8[65536]{0}', space=vmem, size = 0x10000, scoped, tag = 'input window, operand 2, single buffered']
    #allocation8 [shape = 'u8[65536]{0}', space=vmem, size = 0x10000, scoped, tag = 'input window, operand 4, single buffered']
    #allocation9 [shape = 's32[1]{0}', space=sflag, size = 0x4, scoped, tag = 'scoped memory for tpu_custom_call.1']
    #allocation10 [shape = 'u8[65536]{0}', space=vmem, size = 0x10000, scoped, tag = 'input window, operand 6, single buffered']
    #allocation11 [shape = 'u8[4096]{0}', space=vmem, size = 0x1000, scoped, tag = 'output window, operand 0, single buffered']
    #allocation12 [shape = 'u8[4096]{0}', space=vmem, size = 0x1000, scoped, tag = 'output window, operand 1, single buffered']
    #allocation13 [shape = 's32[1]{0}', space=sflag, size = 0x4, scoped, tag = 'scoped memory for tpu_custom_call.1']
    %15 = vsyncpa [#allocation3], 0
    %16 = vsyncpa [#allocation6], 0
    %17 = vsyncpa [#allocation9], 0
    %18 = vsyncpa [#allocation4], 0
    %19 = vsyncpa [#allocation13], 0
    // Predicated region
    $region2: #{tpu_custom_call.1} parent=1 // pred_check
      _
    $region3: #{tpu_custom_call.1} parent=1 // pred_check_branch
      %21 = sbr.rel (0) target = $region5
    $region4: #{tpu_custom_call.1} parent=1 // pred_region
      %23 = vsyncadd [#allocation3], 0
      %s25 = sshll.u32 %s0, 4
      %s26 = int_to_ptr.hbm [resolvable:$true] %s25
      %s27 = sshll.u32 [#allocation2], 4
      %s28 = int_to_ptr.vmem [resolvable:$true] %s27
      %30 = dma.hbm_to_vmem [thread:$0]  %s26, 128, %s28, [#allocation3]
    $region5: #{tpu_custom_call.1} parent=1 // pred_fallthru
      _
    // Predicated region
    $region6: #{tpu_custom_call.1} parent=1 // pred_check
      _
    $region7: #{tpu_custom_call.1} parent=1 // pred_check_branch
      %32 = sbr.rel (0) target = $region9
    $region8: #{tpu_custom_call.1} parent=1 // pred_region
      %34 = vsyncadd [#allocation6], 0
      %s36 = sshll.u32 %s1, 4
      %s37 = int_to_ptr.hbm [resolvable:$true] %s36
      %s38 = sshll.u32 [#allocation5], 4
      %s39 = int_to_ptr.vmem [resolvable:$true] %s38
      %41 = dma.hbm_to_vmem [thread:$0]  %s37, 128, %s39, [#allocation6]
    $region9: #{tpu_custom_call.1} parent=1 // pred_fallthru
      _
    // Predicated region
    $region10: #{tpu_custom_call.1} parent=1 // pred_check
      _
    $region11: #{tpu_custom_call.1} parent=1 // pred_check_branch
      %43 = sbr.rel (0) target = $region13
    $region12: #{tpu_custom_call.1} parent=1 // pred_region
      %45 = vsyncadd [#allocation6], 0
      %s46 = sshll.u32 %s2, 4
      %s47 = int_to_ptr.hbm [resolvable:$true] %s46
      %s48 = sshll.u32 [#allocation7], 4
      %s49 = int_to_ptr.vmem [resolvable:$true] %s48
      %54 = dma.hbm_to_vmem [thread:$0]  %s47, 2048, %s49, [#allocation6], 128, 128, 8
    $region13: #{tpu_custom_call.1} parent=1 // pred_fallthru
      _
    // Predicated region
    $region14: #{tpu_custom_call.1} parent=1 // pred_check
      _
    $region15: #{tpu_custom_call.1} parent=1 // pred_check_branch
      %56 = sbr.rel (0) target = $region17
    $region16: #{tpu_custom_call.1} parent=1 // pred_region
      _
    $region17: #{tpu_custom_call.1} parent=1 // pred_fallthru
      _
    // Predicated region
    $region18: #{tpu_custom_call.1} parent=1 // pred_check
      _
    $region19: #{tpu_custom_call.1} parent=1 // pred_check_branch
      %58 = sbr.rel (0) target = $region21
    $region20: #{tpu_custom_call.1} parent=1 // pred_region
      %60 = vsyncadd [#allocation9], 0
      %s61 = sshll.u32 %s4, 4
      %s62 = int_to_ptr.hbm [resolvable:$true] %s61
      %s63 = sshll.u32 [#allocation8], 4
      %s64 = int_to_ptr.vmem [resolvable:$true] %s63
      %69 = dma.hbm_to_vmem [thread:$0]  %s62, 2048, %s64, [#allocation9], 128, 128, 8
    $region21: #{tpu_custom_call.1} parent=1 // pred_fallthru
      _
    // Predicated region
    $region22: #{tpu_custom_call.1} parent=1 // pred_check
      _
    $region23: #{tpu_custom_call.1} parent=1 // pred_check_branch
      %71 = sbr.rel (0) target = $region25
    $region24: #{tpu_custom_call.1} parent=1 // pred_region
      _
    $region25: #{tpu_custom_call.1} parent=1 // pred_fallthru
      _
    // Predicated region
    $region26: #{tpu_custom_call.1} parent=1 // pred_check
      _
    $region27: #{tpu_custom_call.1} parent=1 // pred_check_branch
      %73 = sbr.rel (0) target = $region29
    $region28: #{tpu_custom_call.1} parent=1 // pred_region
      %75 = vsyncadd [#allocation9], 0
      %s76 = sshll.u32 %s6, 4
      %s77 = int_to_ptr.hbm [resolvable:$true] %s76
      %s78 = sshll.u32 [#allocation10], 4
      %s79 = int_to_ptr.vmem [resolvable:$true] %s78
      %84 = dma.hbm_to_vmem [thread:$0]  %s77, 2048, %s79, [#allocation9], 128, 128, 8
    $region29: #{tpu_custom_call.1} parent=1 // pred_fallthru
      _
    // Predicated region
    $region30: #{tpu_custom_call.1} parent=1 // pred_check
      _
    $region31: #{tpu_custom_call.1} parent=1 // pred_check_branch
      %86 = sbr.rel (0) target = $region33
    $region32: #{tpu_custom_call.1} parent=1 // pred_region
      _
    $region33: #{tpu_custom_call.1} parent=1 // pred_fallthru
      _
    // Predicated region
    $region34: #{tpu_custom_call.1} parent=1 // pred_check
      _
    $region35: #{tpu_custom_call.1} parent=1 // pred_check_branch
      %88 = sbr.rel (0) target = $region37
    $region36: #{tpu_custom_call.1} parent=1 // pred_region
      %90 = dma.done [#allocation3], 128
    $region37: #{tpu_custom_call.1} parent=1 // pred_fallthru
      _
    // Predicated region
    $region38: #{tpu_custom_call.1} parent=1 // pred_check
      _
    $region39: #{tpu_custom_call.1} parent=1 // pred_check_branch
      %92 = sbr.rel (0) target = $region41
    $region40: #{tpu_custom_call.1} parent=1 // pred_region
      %94 = dma.done [#allocation6], 128
    $region41: #{tpu_custom_call.1} parent=1 // pred_fallthru
      _
    // Predicated region
    $region42: #{tpu_custom_call.1} parent=1 // pred_check
      _
    $region43: #{tpu_custom_call.1} parent=1 // pred_check_branch
      %96 = sbr.rel (0) target = $region45
    $region44: #{tpu_custom_call.1} parent=1 // pred_region
      %98 = dma.done [#allocation6], 2048
    $region45: #{tpu_custom_call.1} parent=1 // pred_fallthru
      _
    // Predicated region
    $region46: #{tpu_custom_call.1} parent=1 // pred_check
      _
    $region47: #{tpu_custom_call.1} parent=1 // pred_check_branch
      %100 = sbr.rel (0) target = $region49
    $region48: #{tpu_custom_call.1} parent=1 // pred_region
      %102 = dma.done [#allocation9], 2048
    $region49: #{tpu_custom_call.1} parent=1 // pred_fallthru
      _
    // Predicated region
    $region50: #{tpu_custom_call.1} parent=1 // pred_check
      _
    $region51: #{tpu_custom_call.1} parent=1 // pred_check_branch
      %104 = sbr.rel (0) target = $region53
    $region52: #{tpu_custom_call.1} parent=1 // pred_region
      %106 = dma.done [#allocation9], 2048
    $region53: #{tpu_custom_call.1} parent=1 // pred_fallthru
      _
    %v107 = vld [vmem:[#allocation2] sm:$0xff]
    %v108 = vld [vmem:[#allocation7] sm:$0xff]
    %v109 = vld [vmem:[#allocation7 + $0x8] sm:$0xff]
    %v110 = vld [vmem:[#allocation7 + $0x10] sm:$0xff]
    %v111 = vld [vmem:[#allocation7 + $0x18] sm:$0xff]
    %v112 = vld [vmem:[#allocation7 + $0x20] sm:$0xff]
    %v113 = vld [vmem:[#allocation7 + $0x28] sm:$0xff]
    %v114 = vld [vmem:[#allocation7 + $0x30] sm:$0xff]
    %v115 = vld [vmem:[#allocation7 + $0x38] sm:$0xff]
    %v116 = vld [vmem:[#allocation7 + $0x40] sm:$0xff]
    %v117 = vld [vmem:[#allocation7 + $0x48] sm:$0xff]
    %v118 = vld [vmem:[#allocation7 + $0x50] sm:$0xff]
    %v119 = vld [vmem:[#allocation7 + $0x58] sm:$0xff]
    %v120 = vld [vmem:[#allocation7 + $0x60] sm:$0xff]
    %v121 = vld [vmem:[#allocation7 + $0x68] sm:$0xff]
    %v122 = vld [vmem:[#allocation7 + $0x70] sm:$0xff]
    %v123 = vld [vmem:[#allocation7 + $0x78] sm:$0xff]
    %v124 = vld [vmem:[%s3] sm:$0x1]
    %v126 = vperm.slane %v124, 0
    %128 = vmatpush.msra.mxu0 %v123
    %129 = vmatpush.msra.mxu0 %v122
    %130 = vmatpush.msra.mxu0 %v121
    %131 = vmatpush.msra.mxu0 %v120
    %132 = vmatpush.msra.mxu0 %v119
    %133 = vmatpush.msra.mxu0 %v118
    %134 = vmatpush.msra.mxu0 %v117
    %135 = vmatpush.msra.mxu0 %v116
    %136 = vmatpush.msra.mxu0 %v115
    %137 = vmatpush.msra.mxu0 %v114
    %138 = vmatpush.msra.mxu0 %v113
    %139 = vmatpush.msra.mxu0 %v112
    %140 = vmatpush.msra.mxu0 %v111
    %141 = vmatpush.msra.mxu0 %v110
    %142 = vmatpush.msra.mxu0 %v109
    %143 = vmatpush.msra.mxu0 %v108
    %144 = vmatmul.f32.gmra.mxu0 %v107
    %v145 = vpop.f32.mrf.mxu0
    %v146 = vadd.f32 %v126, %v145
    %147 = vdwg.mxu0
    %vm148 = vcmp.gt.f32.partialorder %v146, 0.0
    %v149 = vmul.f32 %v146, 0.01
    %v150 = vsel %vm148, %v146, %v149
    %v151 = vld [vmem:[#allocation8] sm:$0xff]
    %v152 = vld [vmem:[#allocation8 + $0x8] sm:$0xff]
    %v153 = vld [vmem:[#allocation8 + $0x10] sm:$0xff]
    %v154 = vld [vmem:[#allocation8 + $0x18] sm:$0xff]
    %v155 = vld [vmem:[#allocation8 + $0x20] sm:$0xff]
    %v156 = vld [vmem:[#allocation8 + $0x28] sm:$0xff]
    %v157 = vld [vmem:[#allocation8 + $0x30] sm:$0xff]
    %v158 = vld [vmem:[#allocation8 + $0x38] sm:$0xff]
    %v159 = vld [vmem:[#allocation8 + $0x40] sm:$0xff]
    %v160 = vld [vmem:[#allocation8 + $0x48] sm:$0xff]
    %v161 = vld [vmem:[#allocation8 + $0x50] sm:$0xff]
    %v162 = vld [vmem:[#allocation8 + $0x58] sm:$0xff]
    %v163 = vld [vmem:[#allocation8 + $0x60] sm:$0xff]
    %v164 = vld [vmem:[#allocation8 + $0x68] sm:$0xff]
    %v165 = vld [vmem:[#allocation8 + $0x70] sm:$0xff]
    %v166 = vld [vmem:[#allocation8 + $0x78] sm:$0xff]
    %v167 = vld [vmem:[%s5] sm:$0x1]
    %v169 = vperm.slane %v167, 0
    %171 = vmatpush.msra.mxu0 %v166
    %172 = vmatpush.msra.mxu0 %v165
    %173 = vmatpush.msra.mxu0 %v164
    %174 = vmatpush.msra.mxu0 %v163
    %175 = vmatpush.msra.mxu0 %v162
    %176 = vmatpush.msra.mxu0 %v161
    %177 = vmatpush.msra.mxu0 %v160
    %178 = vmatpush.msra.mxu0 %v159
    %179 = vmatpush.msra.mxu0 %v158
    %180 = vmatpush.msra.mxu0 %v157
    %181 = vmatpush.msra.mxu0 %v156
    %182 = vmatpush.msra.mxu0 %v155
    %183 = vmatpush.msra.mxu0 %v154
    %184 = vmatpush.msra.mxu0 %v153
    %185 = vmatpush.msra.mxu0 %v152
    %186 = vmatpush.msra.mxu0 %v151
    %187 = vmatmul.f32.gmra.mxu0 %v150
    %v188 = vpop.f32.mrf.mxu0
    %v189 = vadd.f32 %v169, %v188
    %190 = vdwg.mxu0
    %vm191 = vcmp.gt.f32.partialorder %v189, 0.0
    %v192 = vmul.f32 %v189, 0.01
    %v193 = vsel %vm191, %v189, %v192
    %v194 = vld [vmem:[#allocation10] sm:$0xff]
    %v195 = vld [vmem:[#allocation10 + $0x8] sm:$0xff]
    %v196 = vld [vmem:[#allocation10 + $0x10] sm:$0xff]
    %v197 = vld [vmem:[#allocation10 + $0x18] sm:$0xff]
    %v198 = vld [vmem:[#allocation10 + $0x20] sm:$0xff]
    %v199 = vld [vmem:[#allocation10 + $0x28] sm:$0xff]
    %v200 = vld [vmem:[#allocation10 + $0x30] sm:$0xff]
    %v201 = vld [vmem:[#allocation10 + $0x38] sm:$0xff]
    %v202 = vld [vmem:[#allocation10 + $0x40] sm:$0xff]
    %v203 = vld [vmem:[#allocation10 + $0x48] sm:$0xff]
    %v204 = vld [vmem:[#allocation10 + $0x50] sm:$0xff]
    %v205 = vld [vmem:[#allocation10 + $0x58] sm:$0xff]
    %v206 = vld [vmem:[#allocation10 + $0x60] sm:$0xff]
    %v207 = vld [vmem:[#allocation10 + $0x68] sm:$0xff]
    %v208 = vld [vmem:[#allocation10 + $0x70] sm:$0xff]
    %v209 = vld [vmem:[#allocation10 + $0x78] sm:$0xff]
    %v210 = vld [vmem:[%s7] sm:$0x1]
    %v212 = vperm.slane %v210, 0
    %214 = vmatpush.msra.mxu0 %v209
    %215 = vmatpush.msra.mxu0 %v208
    %216 = vmatpush.msra.mxu0 %v207
    %217 = vmatpush.msra.mxu0 %v206
    %218 = vmatpush.msra.mxu0 %v205
    %219 = vmatpush.msra.mxu0 %v204
    %220 = vmatpush.msra.mxu0 %v203
    %221 = vmatpush.msra.mxu0 %v202
    %222 = vmatpush.msra.mxu0 %v201
    %223 = vmatpush.msra.mxu0 %v200
    %224 = vmatpush.msra.mxu0 %v199
    %225 = vmatpush.msra.mxu0 %v198
    %226 = vmatpush.msra.mxu0 %v197
    %227 = vmatpush.msra.mxu0 %v196
    %228 = vmatpush.msra.mxu0 %v195
    %229 = vmatpush.msra.mxu0 %v194
    %230 = vmatmul.f32.gmra.mxu0 %v193
    %v231 = vpop.f32.mrf.mxu0
    %v232 = vadd.f32 %v212, %v231
    %233 = vdwg.mxu0
    %234 = vst [vmem:[#allocation11] sm:$0xff] %v232
    %v235 = vlaneseq
    %v236 = vand.u32 %v235, 127
    %vm237 = vcmp.lt.s32.totalorder %v236, 8
    %v238 = vld [vmem:[#allocation5] sm:$0xff]
    %v239 = vadd.f32 %v232, %v238
    %v240 = vsel %vm237, %v239, -1e+30
    %241 = vmax.xlane.f32.xlu0 %v240
    %v242 = vpop.xlane.xlu0 %241
    %v243 = vsub.f32 %v240, %v242
    %v244 = vmul.f32 %v243, 1.442695
    %v245 = vpow.pop %v244
    %v246 = vsel %vm237, %v245, 0.0
    %247 = vadd.xlane.f32.xlu0 %v246
    %v248 = vpop.xlane.xlu0 %247
    %v249 = vrcp.pop %v248
    %v250 = vmul.f32 %v248, %v249
    %v251 = vsub.f32 1.0, %v250
    %v252 = vmul.f32 %v249, %v251
    %v253 = vadd.f32 %v249, %v252
    %vm254 = vweird.f32 %v248
    %vm255 = vweird.f32 %v249
    %vm256 = vmor %vm254, %vm255
    %v257 = vsel %vm256, %v249, %v253
    %v258 = vand.u32 2147483647, %v248
    %vm259 = vcmp.eq.f32.partialorder %v258, 8.507059e+37
    %v260 = vand.u32 %v248, 2147483648
    %v261 = vor.u32 1.1754944e-38, %v260
    %v262 = vsel %vm259, %v261, %v257
    %v263 = vmul.f32 %v246, %v262
    %264 = vst [vmem:[#allocation12] sm:$0xff] %v263
    // Predicated region
    $region54: #{tpu_custom_call.1} parent=1 // pred_check
      _
    $region55: #{tpu_custom_call.1} parent=1 // pred_check_branch
      %266 = sbr.rel (0) target = $region57
    $region56: #{tpu_custom_call.1} parent=1 // pred_region
      %268 = vsyncadd [#allocation4], 0
      %s270 = sshll.u32 [#allocation11], 4
      %s271 = int_to_ptr.vmem [resolvable:$true] %s270
      %s272 = sshll.u32 %s8, 4
      %s273 = int_to_ptr.hbm [resolvable:$true] %s272
      %275 = dma.vmem_to_hbm [thread:$0]  %s271, 128, %s273, [#allocation4]
    $region57: #{tpu_custom_call.1} parent=1 // pred_fallthru
      _
    // Predicated region
    $region58: #{tpu_custom_call.1} parent=1 // pred_check
      _
    $region59: #{tpu_custom_call.1} parent=1 // pred_check_branch
      %277 = sbr.rel (0) target = $region61
    $region60: #{tpu_custom_call.1} parent=1 // pred_region
      %279 = vsyncadd [#allocation13], 0
      %s281 = sshll.u32 [#allocation12], 4
      %s282 = int_to_ptr.vmem [resolvable:$true] %s281
      %s283 = sshll.u32 %s9, 4
      %s284 = int_to_ptr.hbm [resolvable:$true] %s283
      %286 = dma.vmem_to_hbm [thread:$0]  %s282, 128, %s284, [#allocation13]
    $region61: #{tpu_custom_call.1} parent=1 // pred_fallthru
      _
    // Predicated region
    $region62: #{tpu_custom_call.1} parent=1 // pred_check
      _
    $region63: #{tpu_custom_call.1} parent=1 // pred_check_branch
      %288 = sbr.rel (0) target = $region65
    $region64: #{tpu_custom_call.1} parent=1 // pred_region
      %290 = dma.done [#allocation4], 128
    $region65: #{tpu_custom_call.1} parent=1 // pred_fallthru
      _
    // Predicated region
    $region66: #{tpu_custom_call.1} parent=1 // pred_check
      _
    $region67: #{tpu_custom_call.1} parent=1 // pred_check_branch
      %292 = sbr.rel (0) target = $region69
    $region68: #{tpu_custom_call.1} parent=1 // pred_region
      %294 = dma.done [#allocation13], 128
    $region69: #{tpu_custom_call.1} parent=1 // pred_fallthru
      _
    %295 = vsyncpa [#allocation3], 1
    %296 = vsyncpa [#allocation6], 1
    %297 = vsyncpa [#allocation9], 1
    %298 = vsyncpa [#allocation4], 1
    %299 = vsyncpa [#allocation13], 1

</llo_original>
